<compile_context>
chip_gen: v7x
topology: tpu7x:2x2x1
jax: 0.10.0
libtpu: 0.0.40
codegen_flags: <defaults>
</compile_context>

<pallas_src>
import jax
import jax.numpy as jnp
from jax.experimental import pallas as pl
from jax.experimental.pallas import tpu as pltpu


def cml_kernel(jids_ref, gids_ref,        # (1, TM) int32 index tiles (VMEM)
               job_t_ref, geek_t_ref,     # (D, n_job) / (D, n_geek) tables, VMEM-resident
               out_ref):                  # (1, TM) f32 lane-dense output tile
    n_job = job_t_ref.shape[1]
    n_geek = geek_t_ref.shape[1]
    tm = out_ref.shape[1]

    jids = jids_ref[...]                  # (1, TM) int32
    gids = gids_ref[...]

    # One-hot gather on the MXU (exact: weights are 0/1).  Tables never leave
    # VMEM, so the "gather" is two small matmuls instead of tiny HBM DMAs.
    oh_j = (jax.lax.broadcasted_iota(jnp.int32, (n_job, tm), 0) == jids
            ).astype(jnp.float32)         # (n_job, TM)
    oh_g = (jax.lax.broadcasted_iota(jnp.int32, (n_geek, tm), 0) == gids
            ).astype(jnp.float32)         # (n_geek, TM)

    job_e = jnp.dot(job_t_ref[...], oh_j,
                    preferred_element_type=jnp.float32)    # (D, TM)
    geek_e = jnp.dot(geek_t_ref[...], oh_g,
                     preferred_element_type=jnp.float32)   # (D, TM)

    d = job_e - geek_e
    # Sublane reduction over D -> (1, TM): output store stays lane-dense.
    out_ref[...] = jnp.sqrt(jnp.sum(d * d, axis=0, keepdims=True))


def cml_forward(job, geek, job_table, geek_table, *, tm=512):
    """job, geek: (B, S) integer indices. Returns (B, S) float32 L2 distances."""
    B, S = job.shape
    N = B * S
    n_job, D = job_table.shape
    n_geek, D2 = geek_table.shape
    assert D == D2

    # Native-D tables, transposed so the norm reduces over sublanes.  (In a
    # real deployment keep the params stored in this layout; the per-call
    # transpose/cast of a tiny table is negligible here.)
    jt = job_table.astype(jnp.float32).T    # (D, n_job)
    gt = geek_table.astype(jnp.float32).T   # (D, n_geek)

    # Tile size: multiple of 128 lanes, capped to the padded row count.  For
    # realistic N this gives num_tiles >= 2 so both v7x TensorCores get work;
    # for tiny N (like the smoke test) a single tile is unavoidable.
    n128 = pl.cdiv(N, 128) * 128
    tm_eff = min(tm, n128)
    num_tiles = pl.cdiv(N, tm_eff)
    n_pad = num_tiles * tm_eff

    # nn.Embedding would raise on OOB indices; we clamp instead.
    jids = jnp.clip(job.reshape(-1).astype(jnp.int32), 0, n_job - 1)
    gids = jnp.clip(geek.reshape(-1).astype(jnp.int32), 0, n_geek - 1)
    jids = jnp.pad(jids, (0, n_pad - N)).reshape(1, n_pad)
    gids = jnp.pad(gids, (0, n_pad - N)).reshape(1, n_pad)

    cost = pl.CostEstimate(
        flops=2 * n_pad * D * (n_job + n_geek) + 3 * n_pad * D,
        transcendentals=n_pad,
        bytes_accessed=4 * (D * (n_job + n_geek) + 2 * n_pad + n_pad),
    )

    out = pl.pallas_call(
        cml_kernel,
        out_shape=jax.ShapeDtypeStruct((1, n_pad), jnp.float32),
        grid=(num_tiles,),
        in_specs=[
            pl.BlockSpec((1, tm_eff), lambda i: (0, i)),     # job ids tile
            pl.BlockSpec((1, tm_eff), lambda i: (0, i)),     # geek ids tile
            pl.BlockSpec((D, n_job), lambda i: (0, 0)),      # whole job table, VMEM-resident
            pl.BlockSpec((D, n_geek), lambda i: (0, 0)),     # whole geek table, VMEM-resident
        ],
        out_specs=pl.BlockSpec((1, tm_eff), lambda i: (0, i)),
        compiler_params=pltpu.CompilerParams(
            dimension_semantics=("parallel",),
        ),
        cost_estimate=cost,
    )(jids, gids, jt, gt)

    return out[0, :N].reshape(B, S)


if __name__ == "__main__":
    # Shapes consistent with CML(n_job, n_geek, layers_dim); indices are (B, S)
    # so the norm is taken over dim=2 of the (B, S, D) embeddings.
    n_job, n_geek, layers_dim = 300, 200, 32
    B, S = 2, 8

    key = jax.random.PRNGKey(0)
    k_job, k_geek, k_ji, k_gi = jax.random.split(key, 4)

    # nn.Embedding default init ~ N(0, 1)
    job_table = jax.random.normal(k_job, (n_job, layers_dim), dtype=jnp.float32)
    geek_table = jax.random.normal(k_geek, (n_geek, layers_dim), dtype=jnp.float32)

    job_idx = jax.random.randint(k_ji, (B, S), 0, n_job, dtype=jnp.int32)
    geek_idx = jax.random.randint(k_gi, (B, S), 0, n_geek, dtype=jnp.int32)

    out = cml_forward(job_idx, geek_idx, job_table, geek_table)
    out = jax.block_until_ready(out)

    # Pure-JAX reference check
    ref = jnp.linalg.norm(job_table[job_idx] - geek_table[geek_idx], axis=-1)
    assert out.shape == (B, S)
    assert jnp.allclose(out, ref, atol=1e-4, rtol=1e-4)

    print("KERNEL_OK")
</pallas_src>

<mosaic_0001>
module attributes {stable_mosaic.version = 11 : i64} {
  func.func @cml_kernel(%arg0: i32, %arg1: memref<1x128xi32, #tpu.memory_space<vmem>>, %arg2: memref<1x128xi32, #tpu.memory_space<vmem>>, %arg3: memref<32x300xf32, #tpu.memory_space<vmem>>, %arg4: memref<32x200xf32, #tpu.memory_space<vmem>>, %arg5: memref<1x128xf32, #tpu.memory_space<vmem>>) attributes {dimension_semantics = [#tpu.dimension_semantics<parallel>], iteration_bounds = array<i64: 1>, scalar_prefetch = 0 : i64, scratch_operands = 0 : i64, tpu.core_type = #tpu.core_type<tc>, window_params = [{transform_indices = @transform_0, window_bounds = array<i64: 1, 128>}, {transform_indices = @transform_1, window_bounds = array<i64: 1, 128>}, {pipeline_mode = #tpu.pipeline_mode<synchronous>, transform_indices = @transform_2, window_bounds = array<i64: 32, 300>}, {pipeline_mode = #tpu.pipeline_mode<synchronous>, transform_indices = @transform_3, window_bounds = array<i64: 32, 200>}, {transform_indices = @transform_4, window_bounds = array<i64: 1, 128>}]} {
    %c0 = arith.constant 0 : index
    %c0_0 = arith.constant 0 : index
    %0 = vector.load %arg1[%c0, %c0_0] : memref<1x128xi32, #tpu.memory_space<vmem>>, vector<1x128xi32>
    %c0_1 = arith.constant 0 : index
    %c0_2 = arith.constant 0 : index
    %1 = vector.load %arg2[%c0_1, %c0_2] : memref<1x128xi32, #tpu.memory_space<vmem>>, vector<1x128xi32>
    %2 = tpu.iota {dimensions = array<i32: 0>} : vector<300x128xi32>
    %3 = vector.broadcast %0 : vector<1x128xi32> to vector<300x128xi32>
    %4 = arith.cmpi eq, %2, %3 : vector<300x128xi32>
    %5 = arith.extui %4 : vector<300x128xi1> to vector<300x128xi32>
    %6 = arith.sitofp %5 : vector<300x128xi32> to vector<300x128xf32>
    %7 = tpu.iota {dimensions = array<i32: 0>} : vector<200x128xi32>
    %8 = vector.broadcast %1 : vector<1x128xi32> to vector<200x128xi32>
    %9 = arith.cmpi eq, %7, %8 : vector<200x128xi32>
    %10 = arith.extui %9 : vector<200x128xi1> to vector<200x128xi32>
    %11 = arith.sitofp %10 : vector<200x128xi32> to vector<200x128xf32>
    %c0_3 = arith.constant 0 : index
    %c0_4 = arith.constant 0 : index
    %12 = vector.load %arg3[%c0_3, %c0_4] : memref<32x300xf32, #tpu.memory_space<vmem>>, vector<32x300xf32>
    %cst = arith.constant dense<0.000000e+00> : vector<32x128xf32>
    %13 = tpu.matmul %12, %6, %cst {dimension_numbers = #tpu.dot_dimension_numbers<[1], [0], [0], [1], [0, 0, 1, 1], [], []>} : vector<32x300xf32>, vector<300x128xf32>, vector<32x128xf32> -> vector<32x128xf32>
    %c0_5 = arith.constant 0 : index
    %c0_6 = arith.constant 0 : index
    %14 = vector.load %arg4[%c0_5, %c0_6] : memref<32x200xf32, #tpu.memory_space<vmem>>, vector<32x200xf32>
    %cst_7 = arith.constant dense<0.000000e+00> : vector<32x128xf32>
    %15 = tpu.matmul %14, %11, %cst_7 {dimension_numbers = #tpu.dot_dimension_numbers<[1], [0], [0], [1], [0, 0, 1, 1], [], []>} : vector<32x200xf32>, vector<200x128xf32>, vector<32x128xf32> -> vector<32x128xf32>
    %16 = arith.subf %13, %15 : vector<32x128xf32>
    %17 = arith.mulf %16, %16 : vector<32x128xf32>
    %cst_8 = arith.constant dense<0.000000e+00> : vector<128xf32>
    %18 = vector.multi_reduction <add>, %17, %cst_8 [0] : vector<32x128xf32> to vector<128xf32>
    %19 = vector.shape_cast %18 : vector<128xf32> to vector<1x128xf32>
    %20 = math.sqrt %19 : vector<1x128xf32>
    %c0_9 = arith.constant 0 : index
    %c0_10 = arith.constant 0 : index
    %21 = vector.load %arg5[%c0_9, %c0_10] : memref<1x128xf32, #tpu.memory_space<vmem>>, vector<1x128xf32>
    tpu.vector_store %arg5[%c0_9, %c0_10], %20 {strides = array<i32>} : memref<1x128xf32, #tpu.memory_space<vmem>>, vector<1x128xf32>,
    return
  }
  func.func @transform_0(%arg0: i32) -> (i32, i32) {
    %c0_i32 = arith.constant 0 : i32
    %c0_i32_0 = arith.constant 0 : i32
    return %c0_i32, %arg0 : i32, i32
  }
  func.func @transform_1(%arg0: i32) -> (i32, i32) {
    %c0_i32 = arith.constant 0 : i32
    %c0_i32_0 = arith.constant 0 : i32
    return %c0_i32, %arg0 : i32, i32
  }
  func.func @transform_2(%arg0: i32) -> (i32, i32) {
    %c0_i32 = arith.constant 0 : i32
    %c0_i32_0 = arith.constant 0 : i32
    %c0_i32_1 = arith.constant 0 : i32
    return %c0_i32, %c0_i32_0 : i32, i32
  }
  func.func @transform_3(%arg0: i32) -> (i32, i32) {
    %c0_i32 = arith.constant 0 : i32
    %c0_i32_0 = arith.constant 0 : i32
    %c0_i32_1 = arith.constant 0 : i32
    return %c0_i32, %c0_i32_0 : i32, i32
  }
  func.func @transform_4(%arg0: i32) -> (i32, i32) {
    %c0_i32 = arith.constant 0 : i32
    %c0_i32_0 = arith.constant 0 : i32
    return %c0_i32, %arg0 : i32, i32
  }
}

</mosaic_0001>

<llo_original>
// kernel: tpu_custom_call.1
$region0: #{tpu_custom_call.1}
  #allocation0 [shape = 'u32[]', space=smem, size = 0x4, offset = 0x4, fixed_abs, tag = 'smem constant byte address 0x4 - core index']
  #allocation1 [shape = 'u32[144,128]{1,0:T(1,128)}', space=vmem, size = 0x12000, scoped, tag = 'internal scratch']
  %s0 = inlined_call_operand.hbm [shape: s32[1,128], index: 0, kind: input, shape index: {}]
  %s1 = inlined_call_operand.vmem [shape: s32[1,128], index: 1, kind: input, shape index: {}]
  %s2 = inlined_call_operand.hbm [shape: f32[32,300], index: 2, kind: input, shape index: {}]
  %s3 = inlined_call_operand.hbm [shape: f32[32,200], index: 3, kind: input, shape index: {}]
  %s4 = inlined_call_operand.hbm [shape: f32[1,128], index: 4, kind: output, shape index: {}]
  %s5 = sld [smem:[#allocation0]]
  $region38: #{tpu_custom_call.1} parent=0
    _
  %s7 = ssub.s32 1, %s5
  %s8 = scalar_select 0, %s7, %s5
  $region1: #{tpu_custom_call.1} parent=0
    #allocation2 [shape = 'u8[512]{0}', space=vmem, size = 0x400, scoped, tag = 'input window, operand 0, single buffered']
    #allocation3 [shape = 's32[1]{0}', space=sflag, size = 0x4, scoped, tag = 'scoped memory for tpu_custom_call.1']
    #allocation4 [shape = 's32[1]{0}', space=sflag, size = 0x4, scoped, tag = 'scoped memory for tpu_custom_call.1']
    #allocation5 [shape = 'u8[49152]{0}', space=vmem, size = 0xc000, scoped, tag = 'input window, operand 2, single buffered']
    #allocation6 [shape = 's32[1]{0}', space=sflag, size = 0x4, scoped, tag = 'scoped memory for tpu_custom_call.1']
    #allocation7 [shape = 'u8[32768]{0}', space=vmem, size = 0x8000, scoped, tag = 'input window, operand 3, single buffered']
    #allocation8 [shape = 'u8[512]{0}', space=vmem, size = 0x400, scoped, tag = 'output window, operand 0, single buffered']
    %9 = vsyncpa [#allocation3], 0
    %10 = vsyncpa [#allocation6], 0
    %11 = vsyncpa [#allocation4], 0
    // Predicated region
    $region2: #{tpu_custom_call.1} parent=1 // pred_check
      _
    $region3: #{tpu_custom_call.1} parent=1 // pred_check_branch
      %13 = sbr.rel (0) target = $region5
    $region4: #{tpu_custom_call.1} parent=1 // pred_region
      %s15 = ssub.s32 16, 16
      %16 = vsyncadd [#allocation3], %s15
      %s18 = sshll.u32 [#allocation2], 4
      %s19 = int_to_ptr.vmem [resolvable:$true] %s18
      %21 = dma.hbm_to_vmem [thread:$0]  %s0, 16, %s19, [#allocation3]
    $region5: #{tpu_custom_call.1} parent=1 // pred_fallthru
      _
    // Predicated region
    $region6: #{tpu_custom_call.1} parent=1 // pred_check
      _
    $region7: #{tpu_custom_call.1} parent=1 // pred_check_branch
      %23 = sbr.rel (0) target = $region9
    $region8: #{tpu_custom_call.1} parent=1 // pred_region
      _
    $region9: #{tpu_custom_call.1} parent=1 // pred_fallthru
      _
    // Predicated region
    $region10: #{tpu_custom_call.1} parent=1 // pred_check
      _
    $region11: #{tpu_custom_call.1} parent=1 // pred_check_branch
      %25 = sbr.rel (0) target = $region13
    $region12: #{tpu_custom_call.1} parent=1 // pred_region
      %s27 = ssub.s32 1536, 1536
      %28 = vsyncadd [#allocation6], %s27
      %s29 = sshll.u32 [#allocation5], 4
      %s30 = int_to_ptr.vmem [resolvable:$true] %s29
      %35 = dma.hbm_to_vmem [thread:$0]  %s2, 1536, %s30, [#allocation6], 384, 384, 24
    $region13: #{tpu_custom_call.1} parent=1 // pred_fallthru
      _
    // Predicated region
    $region14: #{tpu_custom_call.1} parent=1 // pred_check
      _
    $region15: #{tpu_custom_call.1} parent=1 // pred_check_branch
      %37 = sbr.rel (0) target = $region17
    $region16: #{tpu_custom_call.1} parent=1 // pred_region
      %s39 = ssub.s32 1024, 1024
      %40 = vsyncadd [#allocation6], %s39
      %s41 = sshll.u32 [#allocation7], 4
      %s42 = int_to_ptr.vmem [resolvable:$true] %s41
      %47 = dma.hbm_to_vmem [thread:$0]  %s3, 1024, %s42, [#allocation6], 256, 256, 16
    $region17: #{tpu_custom_call.1} parent=1 // pred_fallthru
      _
    // Predicated region
    $region18: #{tpu_custom_call.1} parent=1 // pred_check
      _
    $region19: #{tpu_custom_call.1} parent=1 // pred_check_branch
      %49 = sbr.rel (0) target = $region21
    $region20: #{tpu_custom_call.1} parent=1 // pred_region
      %50 = dma.done [#allocation3], 16
    $region21: #{tpu_custom_call.1} parent=1 // pred_fallthru
      _
    // Predicated region
    $region22: #{tpu_custom_call.1} parent=1 // pred_check
      _
    $region23: #{tpu_custom_call.1} parent=1 // pred_check_branch
      %52 = sbr.rel (0) target = $region25
    $region24: #{tpu_custom_call.1} parent=1 // pred_region
      %53 = dma.done [#allocation6], 1536
    $region25: #{tpu_custom_call.1} parent=1 // pred_fallthru
      _
    // Predicated region
    $region26: #{tpu_custom_call.1} parent=1 // pred_check
      _
    $region27: #{tpu_custom_call.1} parent=1 // pred_check_branch
      %55 = sbr.rel (0) target = $region29
    $region28: #{tpu_custom_call.1} parent=1 // pred_region
      %56 = dma.done [#allocation6], 1024
    $region29: #{tpu_custom_call.1} parent=1 // pred_fallthru
      _
    %v57 = vld [vmem:[#allocation2] sm:$0x1]
    %v58 = vld [vmem:[%s1] sm:$0x1]
    %v59 = vlaneseq
    %v60 = vshrl.u32 %v59, 7
    %v61 = vadd.s32 %v60, 8
    %v62 = vadd.s32 %v60, 16
    %v63 = vadd.s32 %v60, 24
    %v64 = vadd.s32 %v60, 32
    %v65 = vadd.s32 %v60, 40
    %v66 = vadd.s32 %v60, 48
    %v67 = vadd.s32 %v60, 56
    %v68 = vadd.s32 %v60, 64
    %v69 = vadd.s32 %v60, 72
    %v70 = vadd.s32 %v60, 80
    %v71 = vadd.s32 %v60, 88
    %v72 = vadd.s32 %v60, 96
    %v73 = vadd.s32 %v60, 104
    %v74 = vadd.s32 %v60, 112
    %v75 = vadd.s32 %v60, 120
    %v76 = vadd.s32 %v60, 128
    %v77 = vadd.s32 %v60, 136
    %v78 = vadd.s32 %v60, 144
    %v79 = vadd.s32 %v60, 152
    %v80 = vadd.s32 %v60, 160
    %v81 = vadd.s32 %v60, 168
    %v82 = vadd.s32 %v60, 176
    %v83 = vadd.s32 %v60, 184
    %v84 = vadd.s32 %v60, 192
    %v85 = vadd.s32 %v60, 200
    %v86 = vadd.s32 %v60, 208
    %v87 = vadd.s32 %v60, 216
    %v88 = vadd.s32 %v60, 224
    %v89 = vadd.s32 %v60, 232
    %v90 = vadd.s32 %v60, 240
    %v91 = vadd.s32 %v60, 248
    %v92 = vadd.s32 %v60, 256
    %v93 = vadd.s32 %v60, 264
    %v94 = vadd.s32 %v60, 272
    %v95 = vadd.s32 %v60, 280
    %v96 = vadd.s32 %v60, 288
    %v97 = vadd.s32 %v60, 296
    %v98 = vlaneseq
    %v99 = vshrl.u32 %v98, 7
    %v100 = vsub.s32 0, %v99
    %v101 = vrot.slane %v57, %v100
    %vm102 = vcmp.eq.s32.totalorder %v60, %v101
    %vm103 = vcmp.eq.s32.totalorder %v61, %v101
    %vm104 = vcmp.eq.s32.totalorder %v62, %v101
    %vm105 = vcmp.eq.s32.totalorder %v63, %v101
    %vm106 = vcmp.eq.s32.totalorder %v64, %v101
    %vm107 = vcmp.eq.s32.totalorder %v65, %v101
    %vm108 = vcmp.eq.s32.totalorder %v66, %v101
    %vm109 = vcmp.eq.s32.totalorder %v67, %v101
    %vm110 = vcmp.eq.s32.totalorder %v68, %v101
    %vm111 = vcmp.eq.s32.totalorder %v69, %v101
    %vm112 = vcmp.eq.s32.totalorder %v70, %v101
    %vm113 = vcmp.eq.s32.totalorder %v71, %v101
    %vm114 = vcmp.eq.s32.totalorder %v72, %v101
    %vm115 = vcmp.eq.s32.totalorder %v73, %v101
    %vm116 = vcmp.eq.s32.totalorder %v74, %v101
    %vm117 = vcmp.eq.s32.totalorder %v75, %v101
    %vm118 = vcmp.eq.s32.totalorder %v76, %v101
    %vm119 = vcmp.eq.s32.totalorder %v77, %v101
    %vm120 = vcmp.eq.s32.totalorder %v78, %v101
    %vm121 = vcmp.eq.s32.totalorder %v79, %v101
    %vm122 = vcmp.eq.s32.totalorder %v80, %v101
    %vm123 = vcmp.eq.s32.totalorder %v81, %v101
    %vm124 = vcmp.eq.s32.totalorder %v82, %v101
    %vm125 = vcmp.eq.s32.totalorder %v83, %v101
    %vm126 = vcmp.eq.s32.totalorder %v84, %v101
    %vm127 = vcmp.eq.s32.totalorder %v85, %v101
    %vm128 = vcmp.eq.s32.totalorder %v86, %v101
    %vm129 = vcmp.eq.s32.totalorder %v87, %v101
    %vm130 = vcmp.eq.s32.totalorder %v88, %v101
    %vm131 = vcmp.eq.s32.totalorder %v89, %v101
    %vm132 = vcmp.eq.s32.totalorder %v90, %v101
    %vm133 = vcmp.eq.s32.totalorder %v91, %v101
    %vm134 = vcmp.eq.s32.totalorder %v92, %v101
    %vm135 = vcmp.eq.s32.totalorder %v93, %v101
    %vm136 = vcmp.eq.s32.totalorder %v94, %v101
    %vm137 = vcmp.eq.s32.totalorder %v95, %v101
    %vm138 = vcmp.eq.s32.totalorder %v96, %v101
    %vm139 = vcmp.eq.s32.totalorder %v97, %v101
    %v140 = vsel %vm102, 1, 0
    %v141 = vsel %vm103, 1, 0
    %v142 = vsel %vm104, 1, 0
    %v143 = vsel %vm105, 1, 0
    %v144 = vsel %vm106, 1, 0
    %v145 = vsel %vm107, 1, 0
    %v146 = vsel %vm108, 1, 0
    %v147 = vsel %vm109, 1, 0
    %v148 = vsel %vm110, 1, 0
    %v149 = vsel %vm111, 1, 0
    %v150 = vsel %vm112, 1, 0
    %v151 = vsel %vm113, 1, 0
    %v152 = vsel %vm114, 1, 0
    %v153 = vsel %vm115, 1, 0
    %v154 = vsel %vm116, 1, 0
    %v155 = vsel %vm117, 1, 0
    %v156 = vsel %vm118, 1, 0
    %v157 = vsel %vm119, 1, 0
    %v158 = vsel %vm120, 1, 0
    %v159 = vsel %vm121, 1, 0
    %v160 = vsel %vm122, 1, 0
    %v161 = vsel %vm123, 1, 0
    %v162 = vsel %vm124, 1, 0
    %v163 = vsel %vm125, 1, 0
    %v164 = vsel %vm126, 1, 0
    %v165 = vsel %vm127, 1, 0
    %v166 = vsel %vm128, 1, 0
    %v167 = vsel %vm129, 1, 0
    %v168 = vsel %vm130, 1, 0
    %v169 = vsel %vm131, 1, 0
    %v170 = vsel %vm132, 1, 0
    %v171 = vsel %vm133, 1, 0
    %v172 = vsel %vm134, 1, 0
    %v173 = vsel %vm135, 1, 0
    %v174 = vsel %vm136, 1, 0
    %v175 = vsel %vm137, 1, 0
    %v176 = vsel %vm138, 1, 0
    %v177 = vsel %vm139, 1, 0
    %v178 = vcvt.s32.f32 %v140
    %v179 = vcvt.s32.f32 %v141
    %v180 = vcvt.s32.f32 %v142
    %v181 = vcvt.s32.f32 %v143
    %v182 = vcvt.s32.f32 %v144
    %v183 = vcvt.s32.f32 %v145
    %v184 = vcvt.s32.f32 %v146
    %v185 = vcvt.s32.f32 %v147
    %v186 = vcvt.s32.f32 %v148
    %v187 = vcvt.s32.f32 %v149
    %v188 = vcvt.s32.f32 %v150
    %v189 = vcvt.s32.f32 %v151
    %v190 = vcvt.s32.f32 %v152
    %v191 = vcvt.s32.f32 %v153
    %v192 = vcvt.s32.f32 %v154
    %v193 = vcvt.s32.f32 %v155
    %v194 = vcvt.s32.f32 %v156
    %v195 = vcvt.s32.f32 %v157
    %v196 = vcvt.s32.f32 %v158
    %v197 = vcvt.s32.f32 %v159
    %v198 = vcvt.s32.f32 %v160
    %v199 = vcvt.s32.f32 %v161
    %v200 = vcvt.s32.f32 %v162
    %v201 = vcvt.s32.f32 %v163
    %v202 = vcvt.s32.f32 %v164
    %v203 = vcvt.s32.f32 %v165
    %v204 = vcvt.s32.f32 %v166
    %v205 = vcvt.s32.f32 %v167
    %v206 = vcvt.s32.f32 %v168
    %v207 = vcvt.s32.f32 %v169
    %v208 = vcvt.s32.f32 %v170
    %v209 = vcvt.s32.f32 %v171
    %v210 = vcvt.s32.f32 %v172
    %v211 = vcvt.s32.f32 %v173
    %v212 = vcvt.s32.f32 %v174
    %v213 = vcvt.s32.f32 %v175
    %v214 = vcvt.s32.f32 %v176
    %v215 = vcvt.s32.f32 %v177
    %v216 = vlaneseq
    %v217 = vshrl.u32 %v216, 7
    %v218 = vsub.s32 0, %v217
    %v219 = vrot.slane %v58, %v218
    %vm220 = vcmp.eq.s32.totalorder %v60, %v219
    %vm221 = vcmp.eq.s32.totalorder %v61, %v219
    %vm222 = vcmp.eq.s32.totalorder %v62, %v219
    %vm223 = vcmp.eq.s32.totalorder %v63, %v219
    %vm224 = vcmp.eq.s32.totalorder %v64, %v219
    %vm225 = vcmp.eq.s32.totalorder %v65, %v219
    %vm226 = vcmp.eq.s32.totalorder %v66, %v219
    %vm227 = vcmp.eq.s32.totalorder %v67, %v219
    %vm228 = vcmp.eq.s32.totalorder %v68, %v219
    %vm229 = vcmp.eq.s32.totalorder %v69, %v219
    %vm230 = vcmp.eq.s32.totalorder %v70, %v219
    %vm231 = vcmp.eq.s32.totalorder %v71, %v219
    %vm232 = vcmp.eq.s32.totalorder %v72, %v219
    %vm233 = vcmp.eq.s32.totalorder %v73, %v219
    %vm234 = vcmp.eq.s32.totalorder %v74, %v219
    %vm235 = vcmp.eq.s32.totalorder %v75, %v219
    %vm236 = vcmp.eq.s32.totalorder %v76, %v219
    %vm237 = vcmp.eq.s32.totalorder %v77, %v219
    %vm238 = vcmp.eq.s32.totalorder %v78, %v219
    %vm239 = vcmp.eq.s32.totalorder %v79, %v219
    %vm240 = vcmp.eq.s32.totalorder %v80, %v219
    %vm241 = vcmp.eq.s32.totalorder %v81, %v219
    %vm242 = vcmp.eq.s32.totalorder %v82, %v219
    %vm243 = vcmp.eq.s32.totalorder %v83, %v219
    %vm244 = vcmp.eq.s32.totalorder %v84, %v219
    %v245 = vsel %vm220, 1, 0
    %v246 = vsel %vm221, 1, 0
    %v247 = vsel %vm222, 1, 0
    %v248 = vsel %vm223, 1, 0
    %v249 = vsel %vm224, 1, 0
    %v250 = vsel %vm225, 1, 0
    %v251 = vsel %vm226, 1, 0
    %v252 = vsel %vm227, 1, 0
    %v253 = vsel %vm228, 1, 0
    %v254 = vsel %vm229, 1, 0
    %v255 = vsel %vm230, 1, 0
    %v256 = vsel %vm231, 1, 0
    %v257 = vsel %vm232, 1, 0
    %v258 = vsel %vm233, 1, 0
    %v259 = vsel %vm234, 1, 0
    %v260 = vsel %vm235, 1, 0
    %v261 = vsel %vm236, 1, 0
    %v262 = vsel %vm237, 1, 0
    %v263 = vsel %vm238, 1, 0
    %v264 = vsel %vm239, 1, 0
    %v265 = vsel %vm240, 1, 0
    %v266 = vsel %vm241, 1, 0
    %v267 = vsel %vm242, 1, 0
    %v268 = vsel %vm243, 1, 0
    %v269 = vsel %vm244, 1, 0
    %v270 = vcvt.s32.f32 %v245
    %v271 = vcvt.s32.f32 %v246
    %v272 = vcvt.s32.f32 %v247
    %v273 = vcvt.s32.f32 %v248
    %v274 = vcvt.s32.f32 %v249
    %v275 = vcvt.s32.f32 %v250
    %v276 = vcvt.s32.f32 %v251
    %v277 = vcvt.s32.f32 %v252
    %v278 = vcvt.s32.f32 %v253
    %v279 = vcvt.s32.f32 %v254
    %v280 = vcvt.s32.f32 %v255
    %v281 = vcvt.s32.f32 %v256
    %v282 = vcvt.s32.f32 %v257
    %v283 = vcvt.s32.f32 %v258
    %v284 = vcvt.s32.f32 %v259
    %v285 = vcvt.s32.f32 %v260
    %v286 = vcvt.s32.f32 %v261
    %v287 = vcvt.s32.f32 %v262
    %v288 = vcvt.s32.f32 %v263
    %v289 = vcvt.s32.f32 %v264
    %v290 = vcvt.s32.f32 %v265
    %v291 = vcvt.s32.f32 %v266
    %v292 = vcvt.s32.f32 %v267
    %v293 = vcvt.s32.f32 %v268
    %v294 = vcvt.s32.f32 %v269
    %v295 = vld [vmem:[#allocation5] sm:$0xff]
    %v296 = vld [vmem:[#allocation5 + $0x8] sm:$0xff]
    %v297 = vld [vmem:[#allocation5 + $0x10] sm:$0xff]
    %v298 = vld [vmem:[#allocation5 + $0x18] sm:$0xff]
    %v299 = vld [vmem:[#allocation5 + $0x20] sm:$0xff]
    %v300 = vld [vmem:[#allocation5 + $0x28] sm:$0xff]
    %v301 = vld [vmem:[#allocation5 + $0x30] sm:$0xff]
    %v302 = vld [vmem:[#allocation5 + $0x38] sm:$0xff]
    %v303 = vld [vmem:[#allocation5 + $0x40] sm:$0xff]
    %v304 = vld [vmem:[#allocation5 + $0x48] sm:$0xff]
    %v305 = vld [vmem:[#allocation5 + $0x50] sm:$0xff]
    %v306 = vld [vmem:[#allocation5 + $0x58] sm:$0xff]
    %vm307 = vcmask 359424
    %v309 = vsel %vm307, %v297, 0
    %v312 = vsel %vm307, %v300, 0
    %v315 = vsel %vm307, %v303, 0
    %v318 = vsel %vm307, %v306, 0
    %vm320 = vcmask 1043456
    %v322 = vsel %vm320, %v215, 0
    %324 = vmatprep.subr.mxu0 0.0
    %325 = vmatpush1.msra.mxu0 %v178
    %326 = vmatprep.subr.mxu0 0.0
    %327 = vmatpush1.msra.mxu0 %v179
    %328 = vmatprep.subr.mxu0 0.0
    %329 = vmatpush1.msra.mxu0 %v180
    %330 = vmatprep.subr.mxu0 0.0
    %331 = vmatpush1.msra.mxu0 %v181
    %332 = vmatprep.subr.mxu0 0.0
    %333 = vmatpush1.msra.mxu0 %v182
    %334 = vmatprep.subr.mxu0 0.0
    %335 = vmatpush1.msra.mxu0 %v183
    %336 = vmatprep.subr.mxu0 0.0
    %337 = vmatpush1.msra.mxu0 %v184
    %338 = vmatprep.subr.mxu0 0.0
    %339 = vmatpush1.msra.mxu0 %v185
    %340 = vmatprep.subr.mxu0 0.0
    %341 = vmatpush1.msra.mxu0 %v186
    %342 = vmatprep.subr.mxu0 0.0
    %343 = vmatpush1.msra.mxu0 %v187
    %344 = vmatprep.subr.mxu0 0.0
    %345 = vmatpush1.msra.mxu0 %v188
    %346 = vmatprep.subr.mxu0 0.0
    %347 = vmatpush1.msra.mxu0 %v189
    %348 = vmatprep.subr.mxu0 0.0
    %349 = vmatpush1.msra.mxu0 %v190
    %350 = vmatprep.subr.mxu0 0.0
    %351 = vmatpush1.msra.mxu0 %v191
    %352 = vmatprep.subr.mxu0 0.0
    %353 = vmatpush1.msra.mxu0 %v192
    %354 = vmatprep.subr.mxu0 0.0
    %355 = vmatpush1.msra.mxu0 %v193
    %356 = vmatprep.subr.mxu0 0.0
    %357 = vmatpush1.msra.mxu0 %v194
    %358 = vmatprep.subr.mxu0 0.0
    %359 = vmatpush1.msra.mxu0 %v195
    %360 = vmatprep.subr.mxu0 0.0
    %361 = vmatpush1.msra.mxu0 %v196
    %362 = vmatprep.subr.mxu0 0.0
    %363 = vmatpush1.msra.mxu0 %v197
    %364 = vmatprep.subr.mxu0 0.0
    %365 = vmatpush1.msra.mxu0 %v198
    %366 = vmatprep.subr.mxu0 0.0
    %367 = vmatpush1.msra.mxu0 %v199
    %368 = vmatprep.subr.mxu0 0.0
    %369 = vmatpush1.msra.mxu0 %v200
    %370 = vmatprep.subr.mxu0 0.0
    %371 = vmatpush1.msra.mxu0 %v201
    %372 = vmatprep.subr.mxu0 0.0
    %373 = vmatpush1.msra.mxu0 %v202
    %374 = vmatprep.subr.mxu0 0.0
    %375 = vmatpush1.msra.mxu0 %v203
    %376 = vmatprep.subr.mxu0 0.0
    %377 = vmatpush1.msra.mxu0 %v204
    %378 = vmatprep.subr.mxu0 0.0
    %379 = vmatpush1.msra.mxu0 %v205
    %380 = vmatprep.subr.mxu0 0.0
    %381 = vmatpush1.msra.mxu0 %v206
    %382 = vmatprep.subr.mxu0 0.0
    %383 = vmatpush1.msra.mxu0 %v207
    %384 = vmatprep.subr.mxu0 0.0
    %385 = vmatpush1.msra.mxu0 %v208
    %386 = vmatprep.subr.mxu0 0.0
    %387 = vmatpush1.msra.mxu0 %v209
    %388 = vmatprep.mubr.f32.mxu0 %v296
    %389 = vmatmul.mubr.f32.gmra.mrb[0].mxu0 %v295
    %v390 = vpop.f32.mrb[0].mxu0
    %v391 = vadd.f32 0.0, %v390
    %v392 = vpop.f32.mrb[0].mxu0
    %393 = vmatprep.mubr.f32.mxu0 %v299
    %394 = vmatmul.mubr.f32.gmra.mrb[0].mxu0 %v298
    %v395 = vpop.f32.mrb[0].mxu0
    %v396 = vadd.f32 0.0, %v395
    %v397 = vpop.f32.mrb[0].mxu0
    %398 = vmatprep.mubr.f32.mxu0 %v302
    %399 = vmatmul.mubr.f32.gmra.mrb[0].mxu0 %v301
    %v400 = vpop.f32.mrb[0].mxu0
    %v401 = vadd.f32 0.0, %v400
    %v402 = vpop.f32.mrb[0].mxu0
    %403 = vmatprep.mubr.f32.mxu0 %v305
    %404 = vmatmul.mubr.f32.gmra.mrb[0].mxu0 %v304
    %v405 = vpop.f32.mrb[0].mxu0
    %v406 = vadd.f32 0.0, %v405
    %v407 = vpop.f32.mrb[0].mxu0
    %408 = vdwg.mxu0
    %409 = vmatprep.subr.mxu0 0.0
    %410 = vmatpush1.msra.mxu0 %v210
    %411 = vmatprep.subr.mxu0 0.0
    %412 = vmatpush1.msra.mxu0 %v211
    %413 = vmatprep.subr.mxu0 0.0
    %414 = vmatpush1.msra.mxu0 %v212
    %415 = vmatprep.subr.mxu0 0.0
    %416 = vmatpush1.msra.mxu0 %v213
    %417 = vmatprep.subr.mxu0 0.0
    %418 = vmatpush1.msra.mxu0 %v214
    %419 = vmatprep.subr.mxu0 0.0
    %420 = vmatpush1.msra.mxu0 %v322
    %421 = vmatprep.subr.mxu0 0.0
    %422 = vmatpush1.msra.mxu0 0.0
    %423 = vmatprep.subr.mxu0 0.0
    %424 = vmatpush1.msra.mxu0 0.0
    %425 = vmatprep.subr.mxu0 0.0
    %426 = vmatpush1.msra.mxu0 0.0
    %427 = vmatprep.subr.mxu0 0.0
    %428 = vmatpush1.msra.mxu0 0.0
    %429 = vmatprep.subr.mxu0 0.0
    %430 = vmatpush1.msra.mxu0 0.0
    %431 = vmatprep.subr.mxu0 0.0
    %432 = vmatpush1.msra.mxu0 0.0
    %433 = vmatprep.subr.mxu0 0.0
    %434 = vmatpush1.msra.mxu0 0.0
    %435 = vmatprep.subr.mxu0 0.0
    %436 = vmatpush1.msra.mxu0 0.0
    %437 = vmatprep.subr.mxu0 0.0
    %438 = vmatpush1.msra.mxu0 0.0
    %439 = vmatprep.subr.mxu0 0.0
    %440 = vmatpush1.msra.mxu0 0.0
    %441 = vmatprep.subr.mxu0 0.0
    %442 = vmatpush1.msra.mxu0 0.0
    %443 = vmatprep.subr.mxu0 0.0
    %444 = vmatpush1.msra.mxu0 0.0
    %445 = vmatprep.subr.mxu0 0.0
    %446 = vmatpush1.msra.mxu0 0.0
    %447 = vmatprep.subr.mxu0 0.0
    %448 = vmatpush1.msra.mxu0 0.0
    %449 = vmatprep.subr.mxu0 0.0
    %450 = vmatpush1.msra.mxu0 0.0
    %451 = vmatprep.subr.mxu0 0.0
    %452 = vmatpush1.msra.mxu0 0.0
    %453 = vmatprep.subr.mxu0 0.0
    %454 = vmatpush1.msra.mxu0 0.0
    %455 = vmatprep.subr.mxu0 0.0
    %456 = vmatpush1.msra.mxu0 0.0
    %457 = vmatprep.subr.mxu0 0.0
    %458 = vmatpush1.msra.mxu0 0.0
    %459 = vmatprep.subr.mxu0 0.0
    %460 = vmatpush1.msra.mxu0 0.0
    %461 = vmatprep.subr.mxu0 0.0
    %462 = vmatpush1.msra.mxu0 0.0
    %463 = vmatprep.subr.mxu0 0.0
    %464 = vmatpush1.msra.mxu0 0.0
    %465 = vmatprep.subr.mxu0 0.0
    %466 = vmatpush1.msra.mxu0 0.0
    %467 = vmatprep.subr.mxu0 0.0
    %468 = vmatpush1.msra.mxu0 0.0
    %469 = vmatprep.subr.mxu0 0.0
    %470 = vmatpush1.msra.mxu0 0.0
    %471 = vmatprep.subr.mxu0 0.0
    %472 = vmatpush1.msra.mxu0 0.0
    %473 = vmatprep.mubr.f32.mxu0 0.0
    %474 = vmatmul.mubr.f32.gmra.mrb[0].mxu0 %v309
    %v475 = vpop.f32.mrb[0].mxu0
    %v476 = vadd.f32 %v391, %v475
    %v477 = vpop.f32.mrb[0].mxu0
    %478 = vmatprep.mubr.f32.mxu0 0.0
    %479 = vmatmul.mubr.f32.gmra.mrb[0].mxu0 %v312
    %v480 = vpop.f32.mrb[0].mxu0
    %v481 = vadd.f32 %v396, %v480
    %v482 = vpop.f32.mrb[0].mxu0
    %483 = vmatprep.mubr.f32.mxu0 0.0
    %484 = vmatmul.mubr.f32.gmra.mrb[0].mxu0 %v315
    %v485 = vpop.f32.mrb[0].mxu0
    %v486 = vadd.f32 %v401, %v485
    %v487 = vpop.f32.mrb[0].mxu0
    %488 = vmatprep.mubr.f32.mxu0 0.0
    %489 = vmatmul.mubr.f32.gmra.mrb[0].mxu0 %v318
    %v490 = vpop.f32.mrb[0].mxu0
    %v491 = vadd.f32 %v406, %v490
    %v492 = vpop.f32.mrb[0].mxu0
    %493 = vdwg.mxu0
    %v494 = vld [vmem:[#allocation7] sm:$0xff]
    %v495 = vld [vmem:[#allocation7 + $0x8] sm:$0xff]
    %v496 = vld [vmem:[#allocation7 + $0x10] sm:$0xff]
    %v497 = vld [vmem:[#allocation7 + $0x18] sm:$0xff]
    %v498 = vld [vmem:[#allocation7 + $0x20] sm:$0xff]
    %v499 = vld [vmem:[#allocation7 + $0x28] sm:$0xff]
    %v500 = vld [vmem:[#allocation7 + $0x30] sm:$0xff]
    %v501 = vld [vmem:[#allocation7 + $0x38] sm:$0xff]
    %vm502 = vcmask 588800
    %v504 = vsel %vm502, %v495, 0
    %v507 = vsel %vm502, %v497, 0
    %v510 = vsel %vm502, %v499, 0
    %v513 = vsel %vm502, %v501, 0
    %515 = vmatprep.subr.mxu0 0.0
    %516 = vmatpush1.msra.mxu0 %v270
    %517 = vmatprep.subr.mxu0 0.0
    %518 = vmatpush1.msra.mxu0 %v271
    %519 = vmatprep.subr.mxu0 0.0
    %520 = vmatpush1.msra.mxu0 %v272
    %521 = vmatprep.subr.mxu0 0.0
    %522 = vmatpush1.msra.mxu0 %v273
    %523 = vmatprep.subr.mxu0 0.0
    %524 = vmatpush1.msra.mxu0 %v274
    %525 = vmatprep.subr.mxu0 0.0
    %526 = vmatpush1.msra.mxu0 %v275
    %527 = vmatprep.subr.mxu0 0.0
    %528 = vmatpush1.msra.mxu0 %v276
    %529 = vmatprep.subr.mxu0 0.0
    %530 = vmatpush1.msra.mxu0 %v277
    %531 = vmatprep.subr.mxu0 0.0
    %532 = vmatpush1.msra.mxu0 %v278
    %533 = vmatprep.subr.mxu0 0.0
    %534 = vmatpush1.msra.mxu0 %v279
    %535 = vmatprep.subr.mxu0 0.0
    %536 = vmatpush1.msra.mxu0 %v280
    %537 = vmatprep.subr.mxu0 0.0
    %538 = vmatpush1.msra.mxu0 %v281
    %539 = vmatprep.subr.mxu0 0.0
    %540 = vmatpush1.msra.mxu0 %v282
    %541 = vmatprep.subr.mxu0 0.0
    %542 = vmatpush1.msra.mxu0 %v283
    %543 = vmatprep.subr.mxu0 0.0
    %544 = vmatpush1.msra.mxu0 %v284
    %545 = vmatprep.subr.mxu0 0.0
    %546 = vmatpush1.msra.mxu0 %v285
    %547 = vmatprep.subr.mxu0 0.0
    %548 = vmatpush1.msra.mxu0 %v286
    %549 = vmatprep.subr.mxu0 0.0
    %550 = vmatpush1.msra.mxu0 %v287
    %551 = vmatprep.subr.mxu0 0.0
    %552 = vmatpush1.msra.mxu0 %v288
    %553 = vmatprep.subr.mxu0 0.0
    %554 = vmatpush1.msra.mxu0 %v289
    %555 = vmatprep.subr.mxu0 0.0
    %556 = vmatpush1.msra.mxu0 %v290
    %557 = vmatprep.subr.mxu0 0.0
    %558 = vmatpush1.msra.mxu0 %v291
    %559 = vmatprep.subr.mxu0 0.0
    %560 = vmatpush1.msra.mxu0 %v292
    %561 = vmatprep.subr.mxu0 0.0
    %562 = vmatpush1.msra.mxu0 %v293
    %563 = vmatprep.subr.mxu0 0.0
    %564 = vmatpush1.msra.mxu0 %v294
    %565 = vmatprep.subr.mxu0 0.0
    %566 = vmatpush1.msra.mxu0 0.0
    %567 = vmatprep.subr.mxu0 0.0
    %568 = vmatpush1.msra.mxu0 0.0
    %569 = vmatprep.subr.mxu0 0.0
    %570 = vmatpush1.msra.mxu0 0.0
    %571 = vmatprep.subr.mxu0 0.0
    %572 = vmatpush1.msra.mxu0 0.0
    %573 = vmatprep.subr.mxu0 0.0
    %574 = vmatpush1.msra.mxu0 0.0
    %575 = vmatprep.subr.mxu0 0.0
    %576 = vmatpush1.msra.mxu0 0.0
    %577 = vmatprep.subr.mxu0 0.0
    %578 = vmatpush1.msra.mxu0 0.0
    %579 = vmatprep.mubr.f32.mxu0 %v504
    %580 = vmatmul.mubr.f32.gmra.mrb[0].mxu0 %v494
    %v581 = vpop.f32.mrb[0].mxu0
    %v582 = vadd.f32 0.0, %v581
    %v583 = vpop.f32.mrb[0].mxu0
    %584 = vmatprep.mubr.f32.mxu0 %v507
    %585 = vmatmul.mubr.f32.gmra.mrb[0].mxu0 %v496
    %v586 = vpop.f32.mrb[0].mxu0
    %v587 = vadd.f32 0.0, %v586
    %v588 = vpop.f32.mrb[0].mxu0
    %589 = vmatprep.mubr.f32.mxu0 %v510
    %590 = vmatmul.mubr.f32.gmra.mrb[0].mxu0 %v498
    %v591 = vpop.f32.mrb[0].mxu0
    %v592 = vadd.f32 0.0, %v591
    %v593 = vpop.f32.mrb[0].mxu0
    %594 = vmatprep.mubr.f32.mxu0 %v513
    %595 = vmatmul.mubr.f32.gmra.mrb[0].mxu0 %v500
    %v596 = vpop.f32.mrb[0].mxu0
    %v597 = vadd.f32 0.0, %v596
    %v598 = vpop.f32.mrb[0].mxu0
    %599 = vdwg.mxu0
    %v600 = vsub.f32 %v476, %v582
    %v601 = vsub.f32 %v481, %v587
    %v602 = vsub.f32 %v486, %v592
    %v603 = vsub.f32 %v491, %v597
    %v604 = vmul.f32 %v600, %v600
    %v605 = vmul.f32 %v601, %v601
    %v606 = vmul.f32 %v602, %v602
    %v607 = vmul.f32 %v603, %v603
    %v608 = vadd.f32 %v604, %v605
    %v609 = vadd.f32 %v608, %v606
    %v610 = vadd.f32 %v609, %v607
    %v611 = vrot.slane %v610, 4
    %v612 = vadd.f32 %v610, %v611
    %v613 = vrot.slane %v612, 2
    %v614 = vadd.f32 %v612, %v613
    %v615 = vrot.slane %v614, 1
    %v616 = vadd.f32 %v614, %v615
    %v617 = vrsqrt.pop %v616
    %v618 = vmul.f32 %v616, %v617
    %vm619 = vcmp.eq.f32.partialorder %v616, inf
    %v620 = vsel %vm619, %v616, %v618
    %vm621 = vcmp.eq.f32.partialorder %v616, 0.0
    %v622 = vand.u32 %v616, 2147483648
    %v623 = vsel %vm621, %v622, %v620
    %624 = vst [vmem:[#allocation8] sm:$0x1] %v623
    // Predicated region
    $region30: #{tpu_custom_call.1} parent=1 // pred_check
      _
    $region31: #{tpu_custom_call.1} parent=1 // pred_check_branch
      %626 = sbr.rel (0) target = $region33
    $region32: #{tpu_custom_call.1} parent=1 // pred_region
      %s628 = ssub.s32 16, 16
      %629 = vsyncadd [#allocation4], %s628
      %s631 = sshll.u32 [#allocation8], 4
      %s632 = int_to_ptr.vmem [resolvable:$true] %s631
      %634 = dma.vmem_to_hbm [thread:$0]  %s632, 16, %s4, [#allocation4]
    $region33: #{tpu_custom_call.1} parent=1 // pred_fallthru
      _
    // Predicated region
    $region34: #{tpu_custom_call.1} parent=1 // pred_check
      _
    $region35: #{tpu_custom_call.1} parent=1 // pred_check_branch
      %636 = sbr.rel (0) target = $region37
    $region36: #{tpu_custom_call.1} parent=1 // pred_region
      %637 = dma.done [#allocation4], 16
    $region37: #{tpu_custom_call.1} parent=1 // pred_fallthru
      _
    %638 = vsyncpa [#allocation3], 1
    %639 = vsyncpa [#allocation6], 1
    %640 = vsyncpa [#allocation4], 1

</llo_original>
